<compile_context>
chip_gen: v7x
topology: tpu7x:2x2x1
jax: 0.10.0
libtpu: 0.0.40
codegen_flags: <defaults>
</compile_context>

<pallas_src>
import functools

import jax
import jax.numpy as jnp
from jax.experimental import pallas as pl
from jax.experimental.pallas import tpu as pltpu


def _rmsnorm_kernel(x_ref, w_ref, o_ref, *, eps: float, exact_type_as: bool):
    # x_ref: (tile_rows, dim)   w_ref: (1, dim)   o_ref: (tile_rows, dim)
    #
    # Ragged last block: out-of-range tail rows contain stale/garbage data and
    # flow through rsqrt (possible NaN/Inf in dead rows). This is safe ONLY
    # because the reduction is per-row and Pallas masks the writeback of
    # out-of-range output rows — do not add cross-row reductions here.
    x = x_ref[...].astype(jnp.float32)                    # x.float()
    ms = jnp.mean(x * x, axis=-1, keepdims=True)          # mean(x^2, -1)  (XLU)
    normed = x * jax.lax.rsqrt(ms + eps)                  # x * rsqrt(ms+eps) (EUP)
    if exact_type_as:
        # Exact torch semantics: _norm(x.float()).type_as(x) then * weight.
        normed = normed.astype(x_ref.dtype).astype(jnp.float32)
    w = w_ref[...].astype(jnp.float32)
    o_ref[...] = (normed * w).astype(o_ref.dtype)          # single lane-dense store


def _round_up(n: int, m: int) -> int:
    return ((n + m - 1) // m) * m


def _cdiv(a: int, b: int) -> int:
    return -(-a // b)


def _per_row_vmem_bytes(dim: int, x_itemsize: int) -> int:
    # 2 input + 2 output pipeline buffers, plus ~3 live f32 intermediates
    # (x_f32, normed, product) per row.
    return 4 * dim * x_itemsize + 3 * dim * 4


def _vmem_capacity_bytes() -> int:
    try:
        return int(pltpu.get_tpu_info().vmem_capacity_bytes)
    except Exception:
        return 64 * 1024 * 1024          # conservative (v7x per-TC) fallback


def _pick_tile_rows(rows: int, dim: int, x_itemsize: int, vmem_budget: int) -> int:
    """Largest sublane-aligned row tile meeting a bytes-per-step target
    while fitting the double-buffered VMEM budget."""
    target_step_bytes = 8 * 1024 * 1024             # aim for >= 8 MiB of input/step
    per_row = _per_row_vmem_bytes(dim, x_itemsize)
    max_rows_vmem = max(1, vmem_budget // per_row)
    rows_for_target = _cdiv(target_step_bytes, dim * x_itemsize)
    # Full sublane packing: 8 rows/vreg for 4-byte dtypes, 16 for 2-byte, 32 for 1-byte.
    sub = 8 if x_itemsize >= 4 else (16 if x_itemsize == 2 else 32)
    tile = min(max_rows_vmem, rows_for_target, _round_up(rows, sub))
    tile = max(sub, (tile // sub) * sub)
    return tile


def rmsnorm(x: jax.Array, weight: jax.Array, eps: float = 1e-6,
            tile_rows: int | None = None, exact_type_as: bool = True,
            buffer_count: int | None = None) -> jax.Array:
    """RMSNorm over the last axis of `x` with scale `weight` (shape [dim])."""
    orig_shape = x.shape
    dim = orig_shape[-1]
    rows = 1
    for s in orig_shape[:-1]:
        rows *= s

    x2d = x.reshape(rows, dim)          # view-level reshape, no HBM copy
    w2d = weight.reshape(1, dim)

    itemsize = jnp.dtype(x.dtype).itemsize
    w_itemsize = jnp.dtype(weight.dtype).itemsize

    # Generation-aware VMEM budget for pipelined buffers (~60% of per-TC VMEM):
    # ~38 MiB on v7x (64 MiB physical), ~76 MiB on v5e/v6e (128 MiB physical).
    vmem_cap = _vmem_capacity_bytes()
    vmem_budget = (vmem_cap * 3) // 5

    if tile_rows is None:
        tile_rows = _pick_tile_rows(rows, dim, itemsize, vmem_budget)

    grid = (pl.cdiv(rows, tile_rows),)  # ragged last block handled by Pallas

    # vmem_limit uses the SAME per-row model as tile selection so the chosen
    # tile is actually compilable at full double-buffering (bf16/int8 inputs
    # have f32 intermediates 2-4x larger than the packed tile).
    vmem_limit = (_per_row_vmem_bytes(dim, itemsize) * tile_rows
                  + 2 * dim * w_itemsize + (2 << 20))
    vmem_limit = max(8 << 20, min(vmem_limit, vmem_cap - (8 << 20)))

    pipeline_mode = pl.Buffered(buffer_count) if buffer_count is not None else None
    x_spec = pl.BlockSpec((tile_rows, dim), lambda i: (i, 0),
                          pipeline_mode=pipeline_mode)
    o_spec = pl.BlockSpec((tile_rows, dim), lambda i: (i, 0),
                          pipeline_mode=pipeline_mode)
    w_spec = pl.BlockSpec((1, dim), lambda i: (0, 0))       # weight stays resident

    cost = pl.CostEstimate(
        flops=4 * rows * dim,                      # sq, mean-acc, scale, weight mul
        transcendentals=rows,                      # one rsqrt per row
        bytes_accessed=2 * rows * dim * itemsize + dim * w_itemsize,
    )

    out = pl.pallas_call(
        functools.partial(_rmsnorm_kernel, eps=eps, exact_type_as=exact_type_as),
        out_shape=jax.ShapeDtypeStruct((rows, dim), x.dtype),
        grid_spec=pltpu.PrefetchScalarGridSpec(
            num_scalar_prefetch=0,
            grid=grid,
            in_specs=[x_spec, w_spec],
            out_specs=o_spec,
        ),
        compiler_params=pltpu.CompilerParams(
            dimension_semantics=("parallel",),
            vmem_limit_bytes=int(vmem_limit)),
        cost_estimate=cost,
    )(x2d, w2d)

    return out.reshape(orig_shape)


def rmsnorm_ref(x, weight, eps=1e-6):
    xf = x.astype(jnp.float32)
    normed = xf * jax.lax.rsqrt(jnp.mean(xf * xf, axis=-1, keepdims=True) + eps)
    return (normed.astype(x.dtype).astype(jnp.float32)
            * weight.astype(jnp.float32)).astype(x.dtype)


if __name__ == "__main__":
    key = jax.random.PRNGKey(0)

    # Case 1: (batch, seq, dim) matching the LLaMA layer usage.
    batch, seq, dim = 2, 8, 128
    x = jax.random.normal(key, (batch, seq, dim), dtype=jnp.float32)
    weight = jnp.ones((dim,), dtype=jnp.float32)   # nn.Parameter(torch.ones(dim))

    out = rmsnorm(x, weight, eps=1e-6)
    jax.block_until_ready(out)
    ref = rmsnorm_ref(x, weight, eps=1e-6)
    assert out.shape == x.shape and out.dtype == x.dtype
    assert jnp.allclose(out, ref, atol=1e-5, rtol=1e-5)

    # Case 2: row count not a multiple of the tile (exercises ragged last block).
    x2 = jax.random.normal(jax.random.PRNGKey(1), (3, 5, dim), dtype=jnp.float32)
    out2 = rmsnorm(x2, weight, eps=1e-6)
    jax.block_until_ready(out2)
    ref2 = rmsnorm_ref(x2, weight, eps=1e-6)
    assert out2.shape == x2.shape
    assert jnp.allclose(out2, ref2, atol=1e-5, rtol=1e-5)

    # Case 3: bf16 input (exercises type_as round-trip + f32-intermediate VMEM model).
    x3 = jax.random.normal(jax.random.PRNGKey(2), (4, 16, dim), dtype=jnp.bfloat16)
    w3 = (1.0 + 0.1 * jax.random.normal(jax.random.PRNGKey(3), (dim,))).astype(jnp.float32)
    out3 = rmsnorm(x3, w3, eps=1e-6)
    jax.block_until_ready(out3)
    ref3 = rmsnorm_ref(x3, w3, eps=1e-6)
    assert out3.shape == x3.shape and out3.dtype == x3.dtype
    assert jnp.allclose(out3.astype(jnp.float32), ref3.astype(jnp.float32),
                        atol=2e-2, rtol=2e-2)

    # Case 4: fast path (skips the type_as round-trip) still close to reference.
    out4 = rmsnorm(x3, w3, eps=1e-6, exact_type_as=False)
    jax.block_until_ready(out4)
    assert jnp.allclose(out4.astype(jnp.float32), ref3.astype(jnp.float32),
                        atol=2e-2, rtol=2e-2)

    print("KERNEL_OK")
</pallas_src>

<mosaic_0001>
module attributes {stable_mosaic.version = 11 : i64} {
  func.func @_rmsnorm_kernel(%arg0: i32, %arg1: memref<16x128xf32, #tpu.memory_space<vmem>>, %arg2: memref<1x128xf32, #tpu.memory_space<vmem>>, %arg3: memref<16x128xf32, #tpu.memory_space<vmem>>) attributes {dimension_semantics = [#tpu.dimension_semantics<parallel>], iteration_bounds = array<i64: 1>, scalar_prefetch = 0 : i64, scratch_operands = 0 : i64, tpu.core_type = #tpu.core_type<tc>, window_params = [{transform_indices = @transform_0, window_bounds = array<i64: 16, 128>}, {pipeline_mode = #tpu.pipeline_mode<synchronous>, transform_indices = @transform_1, window_bounds = array<i64: 1, 128>}, {transform_indices = @transform_2, window_bounds = array<i64: 16, 128>}]} {
    %c0 = arith.constant 0 : index
    %c0_0 = arith.constant 0 : index
    %0 = vector.load %arg1[%c0, %c0_0] : memref<16x128xf32, #tpu.memory_space<vmem>>, vector<16x128xf32>
    %1 = arith.mulf %0, %0 : vector<16x128xf32>
    %cst = arith.constant dense<0.000000e+00> : vector<16xf32>
    %2 = vector.multi_reduction <add>, %1, %cst [1] : vector<16x128xf32> to vector<16xf32>
    %3 = vector.shape_cast %2 : vector<16xf32> to vector<16x1xf32>
    %cst_1 = arith.constant 1.280000e+02 : f32
    %4 = vector.broadcast %cst_1 : f32 to vector<16x1xf32>
    %5 = arith.divf %3, %4 : vector<16x1xf32>
    %cst_2 = arith.constant 9.99999997E-7 : f32
    %6 = vector.broadcast %cst_2 : f32 to vector<16x1xf32>
    %7 = arith.addf %5, %6 : vector<16x1xf32>
    %8 = math.rsqrt %7 : vector<16x1xf32>
    %9 = vector.broadcast %8 : vector<16x1xf32> to vector<16x128xf32>
    %10 = arith.mulf %0, %9 : vector<16x128xf32>
    %c0_3 = arith.constant 0 : index
    %c0_4 = arith.constant 0 : index
    %11 = vector.load %arg2[%c0_3, %c0_4] : memref<1x128xf32, #tpu.memory_space<vmem>>, vector<1x128xf32>
    %12 = vector.broadcast %11 : vector<1x128xf32> to vector<16x128xf32>
    %13 = arith.mulf %10, %12 : vector<16x128xf32>
    %c0_5 = arith.constant 0 : index
    %c0_6 = arith.constant 0 : index
    %14 = vector.load %arg3[%c0_5, %c0_6] : memref<16x128xf32, #tpu.memory_space<vmem>>, vector<16x128xf32>
    tpu.vector_store %arg3[%c0_5, %c0_6], %13 {strides = array<i32>} : memref<16x128xf32, #tpu.memory_space<vmem>>, vector<16x128xf32>,
    return
  }
  func.func @transform_0(%arg0: i32) -> (i32, i32) {
    %c0_i32 = arith.constant 0 : i32
    %c0_i32_0 = arith.constant 0 : i32
    return %arg0, %c0_i32 : i32, i32
  }
  func.func @transform_1(%arg0: i32) -> (i32, i32) {
    %c0_i32 = arith.constant 0 : i32
    %c0_i32_0 = arith.constant 0 : i32
    %c0_i32_1 = arith.constant 0 : i32
    return %c0_i32, %c0_i32_0 : i32, i32
  }
  func.func @transform_2(%arg0: i32) -> (i32, i32) {
    %c0_i32 = arith.constant 0 : i32
    %c0_i32_0 = arith.constant 0 : i32
    return %arg0, %c0_i32 : i32, i32
  }
}

</mosaic_0001>

<llo_original>
// kernel: tpu_custom_call.1
$region0: #{tpu_custom_call.1}
  #allocation0 [shape = 'u32[]', space=smem, size = 0x4, offset = 0x4, fixed_abs, tag = 'smem constant byte address 0x4 - core index']
  #allocation1 [shape = 'u32[144,128]{1,0:T(1,128)}', space=vmem, size = 0x12000, scoped, tag = 'internal scratch']
  %s0 = inlined_call_operand.hbm [shape: f32[16,128], index: 0, kind: input, shape index: {}]
  %s1 = inlined_call_operand.vmem [shape: f32[1,128], index: 1, kind: input, shape index: {}]
  %s2 = inlined_call_operand.hbm [shape: f32[16,128], index: 2, kind: output, shape index: {}]
  %s3 = sld [smem:[#allocation0]]
  $region22: #{tpu_custom_call.1} parent=0
    _
  %s5 = ssub.s32 1, %s3
  %s6 = scalar_select 0, %s5, %s3
  $region1: #{tpu_custom_call.1} parent=0
    #allocation2 [shape = 'u8[8192]{0}', space=vmem, size = 0x2000, scoped, tag = 'input window, operand 0, single buffered']
    #allocation3 [shape = 's32[1]{0}', space=sflag, size = 0x4, scoped, tag = 'scoped memory for tpu_custom_call.1']
    #allocation4 [shape = 's32[1]{0}', space=sflag, size = 0x4, scoped, tag = 'scoped memory for tpu_custom_call.1']
    #allocation5 [shape = 'u8[8192]{0}', space=vmem, size = 0x2000, scoped, tag = 'output window, operand 0, single buffered']
    %7 = vsyncpa [#allocation3], 0
    %8 = vsyncpa [#allocation4], 0
    // Predicated region
    $region2: #{tpu_custom_call.1} parent=1 // pred_check
      _
    $region3: #{tpu_custom_call.1} parent=1 // pred_check_branch
      %10 = sbr.rel (0) target = $region5
    $region4: #{tpu_custom_call.1} parent=1 // pred_region
      %s12 = ssub.s32 256, 256
      %13 = vsyncadd [#allocation3], %s12
      %s14 = sshll.u32 [#allocation2], 4
      %s15 = int_to_ptr.vmem [resolvable:$true] %s14
      %20 = dma.hbm_to_vmem [thread:$0]  %s0, 256, %s15, [#allocation3], 128, 128, 8
    $region5: #{tpu_custom_call.1} parent=1 // pred_fallthru
      _
    // Predicated region
    $region6: #{tpu_custom_call.1} parent=1 // pred_check
      _
    $region7: #{tpu_custom_call.1} parent=1 // pred_check_branch
      %22 = sbr.rel (0) target = $region9
    $region8: #{tpu_custom_call.1} parent=1 // pred_region
      _
    $region9: #{tpu_custom_call.1} parent=1 // pred_fallthru
      _
    // Predicated region
    $region10: #{tpu_custom_call.1} parent=1 // pred_check
      _
    $region11: #{tpu_custom_call.1} parent=1 // pred_check_branch
      %24 = sbr.rel (0) target = $region13
    $region12: #{tpu_custom_call.1} parent=1 // pred_region
      %25 = dma.done [#allocation3], 256
    $region13: #{tpu_custom_call.1} parent=1 // pred_fallthru
      _
    %v26 = vld [vmem:[#allocation2] sm:$0xff]
    %v27 = vld [vmem:[#allocation2 + $0x8] sm:$0xff]
    %v28 = vmul.f32 %v26, %v26
    %v29 = vmul.f32 %v27, %v27
    %30 = vadd.xlane.f32.xlu0 %v28
    %v31 = vpop.xlane.xlu0 %30
    %32 = vadd.xlane.f32.xlu0 %v29
    %v33 = vpop.xlane.xlu0 %32
    %v34 = vrcp.pop 128.0
    %v35 = vmul.f32 %v31, %v34
    %v36 = vmul.f32 %v33, %v34
    %v37 = vadd.f32 %v35, 1e-06
    %v38 = vadd.f32 %v36, 1e-06
    %v39 = vrsqrt.pop %v37
    %v40 = vrsqrt.pop %v38
    %v41 = vmul.f32 %v26, %v39
    %v42 = vmul.f32 %v27, %v40
    %v43 = vld [vmem:[%s1] sm:$0x1]
    %v45 = vlaneseq
    %v46 = vshrl.u32 %v45, 7
    %v47 = vsub.s32 0, %v46
    %v48 = vrot.slane %v43, %v47
    %v50 = vmul.f32 %v41, %v48
    %v51 = vmul.f32 %v42, %v48
    %52 = vst [vmem:[#allocation5] sm:$0xff] %v50
    %53 = vst [vmem:[#allocation5 + $0x8] sm:$0xff] %v51
    // Predicated region
    $region14: #{tpu_custom_call.1} parent=1 // pred_check
      _
    $region15: #{tpu_custom_call.1} parent=1 // pred_check_branch
      %55 = sbr.rel (0) target = $region17
    $region16: #{tpu_custom_call.1} parent=1 // pred_region
      %s57 = ssub.s32 256, 256
      %58 = vsyncadd [#allocation4], %s57
      %s59 = sshll.u32 [#allocation5], 4
      %s60 = int_to_ptr.vmem [resolvable:$true] %s59
      %65 = dma.vmem_to_hbm [thread:$0]  %s60, 256, %s2, [#allocation4], 128, 128, 8
    $region17: #{tpu_custom_call.1} parent=1 // pred_fallthru
      _
    // Predicated region
    $region18: #{tpu_custom_call.1} parent=1 // pred_check
      _
    $region19: #{tpu_custom_call.1} parent=1 // pred_check_branch
      %67 = sbr.rel (0) target = $region21
    $region20: #{tpu_custom_call.1} parent=1 // pred_region
      %68 = dma.done [#allocation4], 256
    $region21: #{tpu_custom_call.1} parent=1 // pred_fallthru
      _
    %69 = vsyncpa [#allocation3], 1
    %70 = vsyncpa [#allocation4], 1

</llo_original>
